<compile_context>
chip_gen: v5e
topology: v5e:2x2
jax: 0.10.0
libtpu: 0.0.40
codegen_flags: <defaults>
</compile_context>

<pallas_src>
import jax
import jax.numpy as jnp
import numpy as np
from jax.experimental import pallas as pl
from jax.experimental.pallas import tpu as pltpu


def _round_up(x, m):
    return (x + m - 1) // m * m


def _sublane_multiple(dtype):
    # f32 -> 8, bf16 -> 16, int8 -> 32 (sub-32-bit dtypes pack along sublanes).
    return max(8, 32 // jnp.dtype(dtype).itemsize)


# ---------------------------------------------------------------------------
# Glue: im2col identical to torch.nn.functional.unfold ordering
#   output (B, C*kh*kw, L); CKK ordering is channel-major then (kh, kw),
#   L is row-major over output spatial positions.
# ---------------------------------------------------------------------------
def unfold_nchw(x, kernel_size, stride, padding, dilation):
    kh, kw = kernel_size
    sh, sw = stride
    ph, pw = padding
    dh, dw = dilation
    B, C, H, W = x.shape
    oh = (H + 2 * ph - dh * (kh - 1) - 1) // sh + 1
    ow = (W + 2 * pw - dw * (kw - 1) - 1) // sw + 1
    xp = jnp.pad(x, ((0, 0), (0, 0), (ph, ph), (pw, pw)))
    cols = []
    for i in range(kh):
        for j in range(kw):
            patch = xp[:, :,
                       i * dh: i * dh + (oh - 1) * sh + 1: sh,
                       j * dw: j * dw + (ow - 1) * sw + 1: sw]
            cols.append(patch.reshape(B, C, oh * ow))
    col = jnp.stack(cols, axis=2)                 # (B, C, kh*kw, L)
    return col.reshape(B, C * kh * kw, oh * ow), (oh, ow)


# ---------------------------------------------------------------------------
# Pallas kernel: per (batch, oc-tile, lane-tile) compute
#   act[oc, k, l] = x_unf[k, l] * w[oc, k]
# ---------------------------------------------------------------------------
def _snn_conv_kernel(x_ref, w_ref, act_ref):
    # x_ref  : (1, CKK, TL)  spikes (int8 or weight dtype)
    # w_ref  : (TOC, CKK, 1) weights; CKK is already on the sublane axis, so only a
    #                        cheap lane splat is needed per step (no transpose relayout).
    # act_ref: (1, TOC, CKK, TL)
    x = x_ref[0].astype(act_ref.dtype)               # (CKK, TL)
    act_ref[0] = w_ref[...] * x[None, :, :]          # (TOC, CKK, 1)*(1, CKK, TL)


# ---------------------------------------------------------------------------
# Tiling / VMEM budgeting
# ---------------------------------------------------------------------------
def _vmem_budget_and_limit():
    """Per-generation VMEM budget for the double-buffered block working set, plus an
    explicit scoped-VMEM limit for the compiler (defaults are only 16/32 MiB)."""
    try:
        cap = int(pltpu.get_tpu_info().vmem_capacity_bytes)
    except Exception:
        cap = 64 << 20                      # conservative fallback = v7x per-core VMEM
    budget = max(8 << 20, min(int(cap * 0.45), 56 << 20))
    limit = max(budget + (16 << 20), 48 << 20)
    limit = min(limit, int(cap * 0.85))
    return budget, limit


def _block_vmem_bytes(toc, tl, ckk, x_dtype, w_dtype, out_dtype):
    """Double-buffered VMEM live set for one grid step (out + x + w blocks)."""
    out_b = toc * _round_up(ckk, _sublane_multiple(out_dtype)) * tl * jnp.dtype(out_dtype).itemsize
    x_b = _round_up(ckk, _sublane_multiple(x_dtype)) * tl * jnp.dtype(x_dtype).itemsize
    # weight block (toc, ckk, 1): the size-1 lane dim pads to 128 lanes in VMEM.
    w_b = toc * _round_up(ckk, _sublane_multiple(w_dtype)) * 128 * jnp.dtype(w_dtype).itemsize
    return 2 * (out_b + x_b + w_b)


def _choose_tiles(oc, ckk, L, x_dtype, w_dtype, out_dtype, budget_bytes):
    """Pick (toc, tl): toc divides OC, tl is a multiple of 128.
    Preference: lane tile >= 512 if the shape allows (HBM roofline plateau), then the
    largest overall block (fewest grid steps), then the larger lane tile."""
    lane_cap = min(2048, _round_up(L, 128))
    lane_opts = list(range(128, lane_cap + 1, 128))
    oc_opts = [d for d in range(1, oc + 1) if oc % d == 0]
    best = None
    for tl in lane_opts:
        for toc in oc_opts:
            if _block_vmem_bytes(toc, tl, ckk, x_dtype, w_dtype, out_dtype) > budget_bytes:
                continue
            key = (min(tl, 512), toc * tl, tl)
            if best is None or key > best[0]:
                best = (key, toc, tl)
    if best is None:
        # Smallest legal configuration; only reachable for absurdly large CKK.
        return 1, 128
    return best[1], best[2]


# ---------------------------------------------------------------------------
# Forward
# ---------------------------------------------------------------------------
def snn_conv2d_forward(x_spikes, trace_in, weight, *, stride=(1, 1),
                       padding=(0, 0), dilation=(1, 1)):
    """Forward pass of the SNN Conv2d connection (delay=0).

    x_spikes : (B, C, H, W) bool/int/float presynaptic spikes
    trace_in : (B, C, H, W) float presynaptic trace
    weight   : (OC, C, kh, kw) float
    returns (activation_potentials, trace_out), each (B, OC, oh, ow, C*kh*kw)
    """
    oc, c, kh, kw = weight.shape
    out_dtype = weight.dtype

    # Keep spikes narrow (int8) through im2col; they are 0/1 so this is exact.
    if x_spikes.dtype == jnp.bool_ or jnp.issubdtype(x_spikes.dtype, jnp.integer):
        x_narrow = x_spikes.astype(jnp.int8)
    else:
        x_narrow = x_spikes.astype(out_dtype)          # convert_spikes

    x_unf, (oh, ow) = unfold_nchw(x_narrow, (kh, kw), stride, padding, dilation)
    # Torch module keeps the trace buffer in float32 regardless of weight dtype.
    t_unf, _ = unfold_nchw(trace_in.astype(jnp.float32), (kh, kw), stride,
                           padding, dilation)
    B, ckk, L = x_unf.shape

    # Weight laid out with CKK on the sublane axis (lane dim of size 1).
    w3 = weight.reshape(oc, ckk, 1)

    budget, vmem_limit = _vmem_budget_and_limit()
    toc, tl = _choose_tiles(oc, ckk, L, x_unf.dtype, w3.dtype, out_dtype, budget)
    n_oc = oc // toc
    n_lt = pl.cdiv(L, tl)     # final lane tile may be ragged -> Pallas masks it

    grid_spec = pltpu.PrefetchScalarGridSpec(
        num_scalar_prefetch=0,
        grid=(B, n_oc, n_lt),
        in_specs=[
            pl.BlockSpec((1, ckk, tl), lambda b, ot, lt: (b, 0, lt)),
            # Weight block index ignores (b, lt) -> not re-DMA'd per lane tile.
            pl.BlockSpec((toc, ckk, 1), lambda b, ot, lt: (ot, 0, 0)),
        ],
        out_specs=pl.BlockSpec((1, toc, ckk, tl), lambda b, ot, lt: (b, ot, 0, lt)),
    )

    act = pl.pallas_call(
        _snn_conv_kernel,
        out_shape=jax.ShapeDtypeStruct((B, oc, ckk, L), out_dtype),
        grid_spec=grid_spec,
        compiler_params=pltpu.CompilerParams(
            dimension_semantics=("parallel", "parallel", "parallel"),
            vmem_limit_bytes=vmem_limit),
    )(x_unf, w3)

    # self.fold(...) in torch is a contiguous .view -> identical to a flat reshape here.
    act = act.reshape(B, oc, oh, ow, ckk)

    # Postsynaptic trace: verbatim broadcast of the unfolded presynaptic trace over OC
    # (update_trace + fold). Pure broadcast, no compute -> plain JAX, outside the kernel.
    trace = jnp.broadcast_to(t_unf[:, None, :, :],
                             (B, oc, ckk, L)).reshape(B, oc, oh, ow, ckk)
    return act, trace


if __name__ == "__main__":
    # Small shapes consistent with the module:
    B, C_in, OC = 2, 4, 8
    H = W = 16
    KH = KW = 3
    stride, padding, dilation = (1, 1), (0, 0), (1, 1)

    key = jax.random.PRNGKey(0)
    kx, kt, kw_ = jax.random.split(key, 3)

    # Presynaptic spikes (bool) and presynaptic trace (float), NCHW.
    x_spikes = jax.random.bernoulli(kx, p=0.3, shape=(B, C_in, H, W))
    trace_in = jax.random.uniform(kt, (B, C_in, H, W), dtype=jnp.float32)
    # reset_weights('uniform', a=0, b=1)
    weight = jax.random.uniform(kw_, (OC, C_in, KH, KW), dtype=jnp.float32)

    act, trace_out = snn_conv2d_forward(
        x_spikes, trace_in, weight,
        stride=stride, padding=padding, dilation=dilation)
    act = jax.block_until_ready(act)
    trace_out = jax.block_until_ready(trace_out)

    # Pure-JAX reference (mirrors the torch ops exactly).
    x_unf, (oh, ow) = unfold_nchw(x_spikes.astype(jnp.float32),
                                  (KH, KW), stride, padding, dilation)
    t_unf, _ = unfold_nchw(trace_in, (KH, KW), stride, padding, dilation)
    ckk = C_in * KH * KW
    w_flat = weight.reshape(OC, ckk)
    ref_act = (x_unf[:, None, :, :] * w_flat[None, :, :, None]
               ).reshape(B, OC, oh, ow, -1)
    ref_trace = jnp.broadcast_to(t_unf[:, None, :, :],
                                 (B, OC, ckk, oh * ow)).reshape(B, OC, oh, ow, -1)

    np.testing.assert_allclose(np.asarray(act), np.asarray(ref_act),
                               rtol=1e-6, atol=1e-6)
    np.testing.assert_allclose(np.asarray(trace_out), np.asarray(ref_trace),
                               rtol=1e-6, atol=1e-6)

    assert act.shape == (B, OC, oh, ow, ckk)
    assert trace_out.shape == (B, OC, oh, ow, ckk)
    print("KERNEL_OK")
</pallas_src>

<mosaic_0001>
module attributes {stable_mosaic.version = 11 : i64} {
  func.func @_snn_conv_kernel(%arg0: i32, %arg1: i32, %arg2: i32, %arg3: memref<1x36x256xi8, #tpu.memory_space<vmem>>, %arg4: memref<8x36x1xf32, #tpu.memory_space<vmem>>, %arg5: memref<1x8x36x256xf32, #tpu.memory_space<vmem>>) attributes {dimension_semantics = [#tpu.dimension_semantics<parallel>, #tpu.dimension_semantics<parallel>, #tpu.dimension_semantics<parallel>], iteration_bounds = array<i64: 2, 1, 1>, scalar_prefetch = 0 : i64, scratch_operands = 0 : i64, tpu.core_type = #tpu.core_type<tc>, window_params = [{transform_indices = @transform_0, window_bounds = array<i64: 1, 36, 256>}, {transform_indices = @transform_1, window_bounds = array<i64: 8, 36, 1>}, {transform_indices = @transform_2, window_bounds = array<i64: 1, 8, 36, 256>}]} {
    %c0 = arith.constant 0 : index
    %c0_0 = arith.constant 0 : index
    %c0_1 = arith.constant 0 : index
    %0 = vector.load %arg3[%c0, %c0_0, %c0_1] : memref<1x36x256xi8, #tpu.memory_space<vmem>>, vector<1x36x256xi8>
    %1 = vector.shape_cast %0 : vector<1x36x256xi8> to vector<36x256xi8>
    %2 = arith.sitofp %1 : vector<36x256xi8> to vector<36x256xf32>
    %c0_2 = arith.constant 0 : index
    %c0_3 = arith.constant 0 : index
    %c0_4 = arith.constant 0 : index
    %3 = vector.load %arg4[%c0_2, %c0_3, %c0_4] : memref<8x36x1xf32, #tpu.memory_space<vmem>>, vector<8x36x1xf32>
    %4 = vector.shape_cast %2 : vector<36x256xf32> to vector<1x36x256xf32>
    %5 = vector.broadcast %3 : vector<8x36x1xf32> to vector<8x36x256xf32>
    %6 = vector.broadcast %4 : vector<1x36x256xf32> to vector<8x36x256xf32>
    %7 = arith.mulf %5, %6 : vector<8x36x256xf32>
    %c0_5 = arith.constant 0 : index
    %c0_6 = arith.constant 0 : index
    %c0_7 = arith.constant 0 : index
    %c0_8 = arith.constant 0 : index
    %8 = vector.load %arg5[%c0_5, %c0_6, %c0_7, %c0_8] : memref<1x8x36x256xf32, #tpu.memory_space<vmem>>, vector<1x8x36x256xf32>
    %9 = vector.shape_cast %8 : vector<1x8x36x256xf32> to vector<8x36x256xf32>
    %10 = vector.shape_cast %7 : vector<8x36x256xf32> to vector<1x8x36x256xf32>
    tpu.vector_store %arg5[%c0_5, %c0_6, %c0_7, %c0_8], %10 {strides = array<i32>} : memref<1x8x36x256xf32, #tpu.memory_space<vmem>>, vector<1x8x36x256xf32>,
    return
  }
  func.func @transform_0(%arg0: i32, %arg1: i32, %arg2: i32) -> (i32, i32, i32) {
    %c0_i32 = arith.constant 0 : i32
    %c0_i32_0 = arith.constant 0 : i32
    return %arg0, %c0_i32, %arg2 : i32, i32, i32
  }
  func.func @transform_1(%arg0: i32, %arg1: i32, %arg2: i32) -> (i32, i32, i32) {
    %c0_i32 = arith.constant 0 : i32
    %c0_i32_0 = arith.constant 0 : i32
    %c0_i32_1 = arith.constant 0 : i32
    return %arg1, %c0_i32, %c0_i32_0 : i32, i32, i32
  }
  func.func @transform_2(%arg0: i32, %arg1: i32, %arg2: i32) -> (i32, i32, i32, i32) {
    %c0_i32 = arith.constant 0 : i32
    %c0_i32_0 = arith.constant 0 : i32
    return %arg0, %arg1, %c0_i32, %arg2 : i32, i32, i32, i32
  }
}

</mosaic_0001>

<llo_original>
// kernel: tpu_custom_call.1
$region0: #{tpu_custom_call.1}
  #allocation0 [shape = 'u32[]', space=smem, size = 0x4, offset = 0x4, fixed_abs, tag = 'smem constant byte address 0x4 - core index']
  #allocation1 [shape = 'u32[72,128]{1,0:T(1,128)}', space=vmem, size = 0x9000, scoped, tag = 'internal scratch']
  %s0 = inlined_call_operand.vmem [shape: s8[2,36,196], index: 0, kind: input, shape index: {}]
  %s1 = inlined_call_operand.vmem [shape: f32[8,36,1], index: 1, kind: input, shape index: {}]
  %s2 = inlined_call_operand.vmem [shape: f32[2,8,36,196], index: 2, kind: output, shape index: {}]
  %s3 = sld [smem:[#allocation0]]
  $region41: #{tpu_custom_call.1} parent=0
    _
  %s5 = ssub.s32 1, %s3
  %s6 = scalar_select 0, %s5, %s3
  loop: start=0, step=1, limit=4
  $region2: #{tpu_custom_call.1} parent=0 // loop_pre_header
    _
  $region3: #{tpu_custom_call.1} parent=0 // loop_header
    %s8 = sphi 0, %s12
    %p9 = scmp.ge.s32.totalorder %s8, 4
    %s15 = sphi 0, %s34
    %s16 = sphi 0, %s30
    %s17 = sphi 0, %s26
    %s18 = sphi 0, %s15
    %s19 = sphi 0, %s16
    %s20 = sphi 0, %s17
    %s21 = sphi 0, %s18
    %s22 = sphi 0, %s19
    %s23 = sphi 0, %s20
    %s39 = sphi 0, %s41
    %s42 = sphi 0, %s39
    %s43 = sphi 0, %s42
    %s59 = sphi 0, %s43
    %s65 = sphi 0, %s67
    %s68 = sphi 0, %s65
    %s69 = sphi 0, %s68
    %s85 = sphi 0, %s69
    %s95 = sphi 0, %s97
    %s98 = sphi 0, %s95
    %s99 = sphi 0, %s98
    %s115 = sphi 0, %s99
  $region4: #{tpu_custom_call.1} parent=0 // loop_header_branch
    %11 = sbr.rel (%p9) target = $region8
  $region5: #{tpu_custom_call.1} parent=0 // loop_body
    %s13 = ssub.s32 %s8, 1
    %s14 = ssub.s32 %s8, 2
    %s24 = sadd.s32 1, %s17
    %p25 = scmp.ge.s32.totalorder %s24, 1
    %s26 = scalar_select %p25, 0, %s24
    %s27 = sadd.s32 1, %s16
    %s28 = scalar_select %p25, %s27, %s16
    %p29 = scmp.ge.s32.totalorder %s28, 1
    %s30 = scalar_select %p29, 0, %s28
    %s31 = sadd.s32 1, %s15
    %s32 = scalar_select %p29, %s31, %s15
    %p33 = scmp.ge.s32.totalorder %s32, 2
    %s34 = scalar_select %p33, 0, %s32
    %s35 = ssub.s32 %s15, %s34
    %s36 = ssub.s32 %s17, %s26
    %s37 = sor.u32 %s35, %s36
    %p38 = scmp.eq.s32.totalorder %s37, 0
    %s40 = sadd.s32 %s39, 1
    %s41 = scalar_select %p38, %s39, %s40
    %p44 = pneg %p38
    %p45 = scmp.eq.s32.totalorder %s8, 1
    %p46 = por %p44, %p45
    %p47 = scmp.ne.s32.totalorder %s39, %s42
    %p48 = scmp.eq.s32.totalorder %s8, 0
    %p49 = por %p47, %p48
    %p50 = scmp.ne.s32.totalorder %s39, %s42
    %p51 = scmp.eq.s32.totalorder %s13, 1
    %p52 = por %p50, %p51
    %p53 = scmp.ne.s32.totalorder %s42, %s43
    %p54 = scmp.eq.s32.totalorder %s13, 0
    %p55 = por %p53, %p54
    %p56 = scmp.ne.s32.totalorder %s42, %s43
    %p57 = scmp.eq.s32.totalorder %s14, 1
    %p58 = por %p56, %p57
    %p60 = scmp.ne.s32.totalorder %s43, %s59
    %p61 = scmp.eq.s32.totalorder %s14, 0
    %p62 = por %p60, %p61
    %s63 = ssub.s32 %s16, %s30
    %p64 = scmp.eq.s32.totalorder %s63, 0
    %s66 = sadd.s32 %s65, 1
    %s67 = scalar_select %p64, %s65, %s66
    %p70 = pneg %p64
    %p71 = scmp.eq.s32.totalorder %s8, 1
    %p72 = por %p70, %p71
    %p73 = scmp.ne.s32.totalorder %s65, %s68
    %p74 = scmp.eq.s32.totalorder %s8, 0
    %p75 = por %p73, %p74
    %p76 = scmp.ne.s32.totalorder %s65, %s68
    %p77 = scmp.eq.s32.totalorder %s13, 1
    %p78 = por %p76, %p77
    %p79 = scmp.ne.s32.totalorder %s68, %s69
    %p80 = scmp.eq.s32.totalorder %s13, 0
    %p81 = por %p79, %p80
    %p82 = scmp.ne.s32.totalorder %s68, %s69
    %p83 = scmp.eq.s32.totalorder %s14, 1
    %p84 = por %p82, %p83
    %p86 = scmp.ne.s32.totalorder %s69, %s85
    %p87 = scmp.eq.s32.totalorder %s14, 0
    %p88 = por %p86, %p87
    %s89 = ssub.s32 %s15, %s34
    %s90 = ssub.s32 %s16, %s30
    %s91 = sor.u32 %s89, %s90
    %s92 = ssub.s32 %s17, %s26
    %s93 = sor.u32 %s91, %s92
    %p94 = scmp.eq.s32.totalorder %s93, 0
    %s96 = sadd.s32 %s95, 1
    %s97 = scalar_select %p94, %s95, %s96
    %p100 = pneg %p94
    %p101 = scmp.eq.s32.totalorder %s8, 1
    %p102 = por %p100, %p101
    %p103 = scmp.ne.s32.totalorder %s95, %s98
    %p104 = scmp.eq.s32.totalorder %s8, 0
    %p105 = por %p103, %p104
    %p106 = scmp.ne.s32.totalorder %s95, %s98
    %p107 = scmp.eq.s32.totalorder %s13, 1
    %p108 = por %p106, %p107
    %p109 = scmp.ne.s32.totalorder %s98, %s99
    %p110 = scmp.eq.s32.totalorder %s13, 0
    %p111 = por %p109, %p110
    %p112 = scmp.ne.s32.totalorder %s98, %s99
    %p113 = scmp.eq.s32.totalorder %s14, 1
    %p114 = por %p112, %p113
    %p116 = scmp.ne.s32.totalorder %s99, %s115
    %p117 = scmp.eq.s32.totalorder %s14, 0
    %p118 = por %p116, %p117
    %p119 = scmp.le.s32.totalorder 1, %s8
    %p120 = scmp.lt.s32.totalorder %s8, 3
    %p121 = pnand %p119, %p120
    %p122 = pneg %p121
    // Predicated region
    $region9: #{tpu_custom_call.1} parent=5 // pred_check
      _
    $region10: #{tpu_custom_call.1} parent=5 // pred_check_branch
      %124 = sbr.rel (%p121) target = $region12
    $region11: #{tpu_custom_call.1} parent=5 // pred_region
      %s125 = ssub.s32 %s8, 1
      // Predicated region
      $region13: #{tpu_custom_call.1} parent=11 // pred_check
        %p126 = pneg %p81
      $region14: #{tpu_custom_call.1} parent=11 // pred_check_branch
        %128 = sbr.rel (%p126) target = $region16
      $region15: #{tpu_custom_call.1} parent=11 // pred_region
        %s129 = smul.u32 8, %s19
        %p130 = scmp.lt.s32.totalorder %s129, 7
        %s131 = scalar_select %p130, %s129, 7
        %s132 = smul.addr %s131, 5
        %s133 = smul.addr %s132, 8
        %s134 = scalar_lea.vmem %s1, %s133
        %s135 = smul.u32 8, %s19
      $region16: #{tpu_custom_call.1} parent=11 // pred_fallthru
        _
    $region12: #{tpu_custom_call.1} parent=5 // pred_fallthru
      _
    %p136 = scmp.lt.s32.totalorder %s8, 2
    // Predicated region
    $region17: #{tpu_custom_call.1} parent=5 // pred_check
      %p137 = pneg %p136
    $region18: #{tpu_custom_call.1} parent=5 // pred_check_branch
      %139 = sbr.rel (%p137) target = $region20
    $region19: #{tpu_custom_call.1} parent=5 // pred_region
      // Predicated region
      $region21: #{tpu_custom_call.1} parent=19 // pred_check
        %p140 = pneg %p49
      $region22: #{tpu_custom_call.1} parent=19 // pred_check_branch
        %142 = sbr.rel (%p140) target = $region24
      $region23: #{tpu_custom_call.1} parent=19 // pred_region
        %s143 = smul.u32 2, %s17
        %p144 = scmp.lt.s32.totalorder %s15, 1
        %s145 = scalar_select %p144, %s15, 1
        %p146 = scmp.lt.s32.totalorder %s143, 1
        %s147 = scalar_select %p146, %s143, 1
        %s148 = smul.addr %s145, 10
        %s149 = sadd.s32 %s147, %s148
        %s150 = smul.addr %s149, 2
        %s151 = scalar_lea.vmem %s0, %s150
        %s152 = smul.u32 2, %s17
      $region24: #{tpu_custom_call.1} parent=19 // pred_fallthru
        _
    $region20: #{tpu_custom_call.1} parent=5 // pred_fallthru
      _
    %p153 = scmp.le.s32.totalorder 1, %s8
    %p154 = scmp.lt.s32.totalorder %s8, 3
    %p155 = pnand %p153, %p154
    %p156 = pneg %p155
    // Predicated region
    $region25: #{tpu_custom_call.1} parent=5 // pred_check
      _
    $region26: #{tpu_custom_call.1} parent=5 // pred_check_branch
      %158 = sbr.rel (%p155) target = $region28
    $region27: #{tpu_custom_call.1} parent=5 // pred_region
      %s159 = ssub.s32 %s8, 1
      %s160 = smul.u32 2, %s20
      %p161 = scmp.lt.s32.totalorder %s18, 1
      %s162 = scalar_select %p161, %s18, 1
      %p163 = scmp.lt.s32.totalorder %s160, 1
      %s164 = scalar_select %p163, %s160, 1
      %s165 = smul.addr %s162, 10
      %s166 = sadd.s32 %s164, %s165
      %s167 = smul.addr %s166, 2
      %s168 = scalar_lea.vmem %s0, %s167
      %p169 = pneg %p55
      %p170 = pneg %p52
      %s171 = smul.u32 8, %s19
      %p172 = scmp.lt.s32.totalorder %s171, 7
      %s173 = scalar_select %p172, %s171, 7
      %s174 = smul.addr %s173, 5
      %s175 = smul.addr %s174, 8
      %s176 = scalar_lea.vmem %s1, %s175
      %p177 = pneg %p81
      %p178 = pneg %p78
      %p179 = pneg %p111
      %p180 = pneg %p108
      %s181 = smul.u32 8, %s19
      %s182 = smul.u32 2, %s20
      %p183 = scmp.lt.s32.totalorder %s18, 1
      %s184 = scalar_select %p183, %s18, 1
      %p185 = scmp.lt.s32.totalorder %s181, 7
      %s186 = scalar_select %p185, %s181, 7
      %p187 = scmp.lt.s32.totalorder %s182, 1
      %s188 = scalar_select %p187, %s182, 1
      %s189 = smul.addr %s186, 10
      %s190 = sadd.s32 %s188, %s189
      %s191 = smul.addr %s184, 80
      %s192 = sadd.s32 %s190, %s191
      %s193 = smul.addr %s192, 8
      %s194 = scalar_lea.vmem %s2, %s193
      %s195 = smul.u32 2, %s20
      %p196 = scmp.lt.s32.totalorder %s18, 1
      %s197 = scalar_select %p196, %s18, 1
      %p198 = scmp.lt.s32.totalorder %s195, 1
      %s199 = scalar_select %p198, %s195, 1
      %s200 = smul.addr %s197, 10
      %s201 = sadd.s32 %s199, %s200
      %s202 = smul.addr %s201, 2
      %s203 = scalar_lea.vmem %s0, %s202
      %s204 = smul.u32 2, %s20
      %s205 = smul.u32 8, %s19
      %p206 = scmp.lt.s32.totalorder %s205, 7
      %s207 = scalar_select %p206, %s205, 7
      %s208 = smul.addr %s207, 5
      %s209 = smul.addr %s208, 8
      %s210 = scalar_lea.vmem %s1, %s209
      %s211 = smul.u32 8, %s19
      %s212 = smul.u32 8, %s19
      %s213 = smul.u32 2, %s20
      %p214 = scmp.lt.s32.totalorder %s18, 1
      %s215 = scalar_select %p214, %s18, 1
      %p216 = scmp.lt.s32.totalorder %s212, 7
      %s217 = scalar_select %p216, %s212, 7
      %p218 = scmp.lt.s32.totalorder %s213, 1
      %s219 = scalar_select %p218, %s213, 1
      %s220 = smul.addr %s217, 10
      %s221 = sadd.s32 %s219, %s220
      %s222 = smul.addr %s215, 80
      %s223 = sadd.s32 %s221, %s222
      %s224 = smul.addr %s223, 8
      %s225 = scalar_lea.vmem %s2, %s224
      %s226 = smul.u32 8, %s19
      %s227 = smul.u32 2, %s20
      %v228 = vld [vmem:[%s203] sm:$0xf]
      %v229 = vld [vmem:[%s203 + $0x4] sm:$0xf]
      %v230 = vld [vmem:[%s203 + $0x8] sm:$0xf]
      %v231 = vld [vmem:[%s203 + $0xc] sm:$0xf]
      %v232 = vld [vmem:[%s203 + $0x10] sm:$0x5]
      %v233 = vunpack.c.0.s8 %v228
      %v234 = vunpack.c.1.s8 %v228
      %v235 = vunpack.c.0.s8 %v229
      %v236 = vunpack.c.1.s8 %v229
      %v237 = vunpack.c.0.s8 %v230
      %v238 = vunpack.c.1.s8 %v230
      %v239 = vunpack.c.0.s8 %v231
      %v240 = vunpack.c.1.s8 %v231
      %v241 = vunpack.c.0.s8 %v232
      %v242 = vunpack.c.1.s8 %v232
      %v243 = vcvt.s32.f32 %v233
      %v244 = vcvt.s32.f32 %v234
      %v245 = vcvt.s32.f32 %v235
      %v246 = vcvt.s32.f32 %v236
      %v247 = vcvt.s32.f32 %v237
      %v248 = vcvt.s32.f32 %v238
      %v249 = vcvt.s32.f32 %v239
      %v250 = vcvt.s32.f32 %v240
      %v251 = vcvt.s32.f32 %v241
      %v252 = vcvt.s32.f32 %v242
      %v253 = vld [vmem:[%s210] sm:$0xff]
      %v254 = vld [vmem:[%s210 + $0x8] sm:$0xff]
      %v255 = vld [vmem:[%s210 + $0x10] sm:$0xff]
      %v256 = vld [vmem:[%s210 + $0x18] sm:$0xff]
      %v257 = vld [vmem:[%s210 + $0x20] sm:$0xf]
      %v258 = vld [vmem:[%s210 + $0x28] sm:$0xff]
      %v259 = vld [vmem:[%s210 + $0x30] sm:$0xff]
      %v260 = vld [vmem:[%s210 + $0x38] sm:$0xff]
      %v261 = vld [vmem:[%s210 + $0x40] sm:$0xff]
      %v262 = vld [vmem:[%s210 + $0x48] sm:$0xf]
      %v263 = vld [vmem:[%s210 + $0x50] sm:$0xff]
      %v264 = vld [vmem:[%s210 + $0x58] sm:$0xff]
      %v265 = vld [vmem:[%s210 + $0x60] sm:$0xff]
      %v266 = vld [vmem:[%s210 + $0x68] sm:$0xff]
      %v267 = vld [vmem:[%s210 + $0x70] sm:$0xf]
      %v268 = vld [vmem:[%s210 + $0x78] sm:$0xff]
      %v269 = vld [vmem:[%s210 + $0x80] sm:$0xff]
      %v270 = vld [vmem:[%s210 + $0x88] sm:$0xff]
      %v271 = vld [vmem:[%s210 + $0x90] sm:$0xff]
      %v272 = vld [vmem:[%s210 + $0x98] sm:$0xf]
      %v273 = vld [vmem:[%s210 + $0xa0] sm:$0xff]
      %v274 = vld [vmem:[%s210 + $0xa8] sm:$0xff]
      %v275 = vld [vmem:[%s210 + $0xb0] sm:$0xff]
      %v276 = vld [vmem:[%s210 + $0xb8] sm:$0xff]
      %v277 = vld [vmem:[%s210 + $0xc0] sm:$0xf]
      %v278 = vld [vmem:[%s210 + $0xc8] sm:$0xff]
      %v279 = vld [vmem:[%s210 + $0xd0] sm:$0xff]
      %v280 = vld [vmem:[%s210 + $0xd8] sm:$0xff]
      %v281 = vld [vmem:[%s210 + $0xe0] sm:$0xff]
      %v282 = vld [vmem:[%s210 + $0xe8] sm:$0xf]
      %v283 = vld [vmem:[%s210 + $0xf0] sm:$0xff]
      %v284 = vld [vmem:[%s210 + $0xf8] sm:$0xff]
      %v285 = vld [vmem:[%s210 + $0x100] sm:$0xff]
      %v286 = vld [vmem:[%s210 + $0x108] sm:$0xff]
      %v287 = vld [vmem:[%s210 + $0x110] sm:$0xf]
      %v288 = vld [vmem:[%s210 + $0x118] sm:$0xff]
      %v289 = vld [vmem:[%s210 + $0x120] sm:$0xff]
      %v290 = vld [vmem:[%s210 + $0x128] sm:$0xff]
      %v291 = vld [vmem:[%s210 + $0x130] sm:$0xff]
      %v292 = vld [vmem:[%s210 + $0x138] sm:$0xf]
      %294 = vset.pattern.permute.xlu0 0
      %295 = vperm.xlu0 %294, %v253
      %v296 = vpop.permute.xlu0 %295
      %299 = vset.pattern.permute.xlu0 0
      %300 = vperm.xlu0 %299, %v254
      %v301 = vpop.permute.xlu0 %300
      %304 = vset.pattern.permute.xlu0 0
      %305 = vperm.xlu0 %304, %v255
      %v306 = vpop.permute.xlu0 %305
      %309 = vset.pattern.permute.xlu0 0
      %310 = vperm.xlu0 %309, %v256
      %v311 = vpop.permute.xlu0 %310
      %314 = vset.pattern.permute.xlu0 0
      %315 = vperm.xlu0 %314, %v257
      %v316 = vpop.permute.xlu0 %315
      %319 = vset.pattern.permute.xlu0 0
      %320 = vperm.xlu0 %319, %v258
      %v321 = vpop.permute.xlu0 %320
      %324 = vset.pattern.permute.xlu0 0
      %325 = vperm.xlu0 %324, %v259
      %v326 = vpop.permute.xlu0 %325
      %329 = vset.pattern.permute.xlu0 0
      %330 = vperm.xlu0 %329, %v260
      %v331 = vpop.permute.xlu0 %330
      %334 = vset.pattern.permute.xlu0 0
      %335 = vperm.xlu0 %334, %v261
      %v336 = vpop.permute.xlu0 %335
      %339 = vset.pattern.permute.xlu0 0
      %340 = vperm.xlu0 %339, %v262
      %v341 = vpop.permute.xlu0 %340
      %344 = vset.pattern.permute.xlu0 0
      %345 = vperm.xlu0 %344, %v263
      %v346 = vpop.permute.xlu0 %345
      %349 = vset.pattern.permute.xlu0 0
      %350 = vperm.xlu0 %349, %v264
      %v351 = vpop.permute.xlu0 %350
      %354 = vset.pattern.permute.xlu0 0
      %355 = vperm.xlu0 %354, %v265
      %v356 = vpop.permute.xlu0 %355
      %359 = vset.pattern.permute.xlu0 0
      %360 = vperm.xlu0 %359, %v266
      %v361 = vpop.permute.xlu0 %360
      %364 = vset.pattern.permute.xlu0 0
      %365 = vperm.xlu0 %364, %v267
      %v366 = vpop.permute.xlu0 %365
      %369 = vset.pattern.permute.xlu0 0
      %370 = vperm.xlu0 %369, %v268
      %v371 = vpop.permute.xlu0 %370
      %374 = vset.pattern.permute.xlu0 0
      %375 = vperm.xlu0 %374, %v269
      %v376 = vpop.permute.xlu0 %375
      %379 = vset.pattern.permute.xlu0 0
      %380 = vperm.xlu0 %379, %v270
      %v381 = vpop.permute.xlu0 %380
      %384 = vset.pattern.permute.xlu0 0
      %385 = vperm.xlu0 %384, %v271
      %v386 = vpop.permute.xlu0 %385
      %389 = vset.pattern.permute.xlu0 0
      %390 = vperm.xlu0 %389, %v272
      %v391 = vpop.permute.xlu0 %390
      %394 = vset.pattern.permute.xlu0 0
      %395 = vperm.xlu0 %394, %v273
      %v396 = vpop.permute.xlu0 %395
      %399 = vset.pattern.permute.xlu0 0
      %400 = vperm.xlu0 %399, %v274
      %v401 = vpop.permute.xlu0 %400
      %404 = vset.pattern.permute.xlu0 0
      %405 = vperm.xlu0 %404, %v275
      %v406 = vpop.permute.xlu0 %405
      %409 = vset.pattern.permute.xlu0 0
      %410 = vperm.xlu0 %409, %v276
      %v411 = vpop.permute.xlu0 %410
      %414 = vset.pattern.permute.xlu0 0
      %415 = vperm.xlu0 %414, %v277
      %v416 = vpop.permute.xlu0 %415
      %419 = vset.pattern.permute.xlu0 0
      %420 = vperm.xlu0 %419, %v278
      %v421 = vpop.permute.xlu0 %420
      %424 = vset.pattern.permute.xlu0 0
      %425 = vperm.xlu0 %424, %v279
      %v426 = vpop.permute.xlu0 %425
      %429 = vset.pattern.permute.xlu0 0
      %430 = vperm.xlu0 %429, %v280
      %v431 = vpop.permute.xlu0 %430
      %434 = vset.pattern.permute.xlu0 0
      %435 = vperm.xlu0 %434, %v281
      %v436 = vpop.permute.xlu0 %435
      %439 = vset.pattern.permute.xlu0 0
      %440 = vperm.xlu0 %439, %v282
      %v441 = vpop.permute.xlu0 %440
      %444 = vset.pattern.permute.xlu0 0
      %445 = vperm.xlu0 %444, %v283
      %v446 = vpop.permute.xlu0 %445
      %449 = vset.pattern.permute.xlu0 0
      %450 = vperm.xlu0 %449, %v284
      %v451 = vpop.permute.xlu0 %450
      %454 = vset.pattern.permute.xlu0 0
      %455 = vperm.xlu0 %454, %v285
      %v456 = vpop.permute.xlu0 %455
      %459 = vset.pattern.permute.xlu0 0
      %460 = vperm.xlu0 %459, %v286
      %v461 = vpop.permute.xlu0 %460
      %464 = vset.pattern.permute.xlu0 0
      %465 = vperm.xlu0 %464, %v287
      %v466 = vpop.permute.xlu0 %465
      %469 = vset.pattern.permute.xlu0 0
      %470 = vperm.xlu0 %469, %v288
      %v471 = vpop.permute.xlu0 %470
      %474 = vset.pattern.permute.xlu0 0
      %475 = vperm.xlu0 %474, %v289
      %v476 = vpop.permute.xlu0 %475
      %479 = vset.pattern.permute.xlu0 0
      %480 = vperm.xlu0 %479, %v290
      %v481 = vpop.permute.xlu0 %480
      %484 = vset.pattern.permute.xlu0 0
      %485 = vperm.xlu0 %484, %v291
      %v486 = vpop.permute.xlu0 %485
      %489 = vset.pattern.permute.xlu0 0
      %490 = vperm.xlu0 %489, %v292
      %v491 = vpop.permute.xlu0 %490
      %v493 = vmul.f32 %v296, %v243
      %v494 = vmul.f32 %v296, %v244
      %v495 = vmul.f32 %v301, %v245
      %v496 = vmul.f32 %v301, %v246
      %v497 = vmul.f32 %v306, %v247
      %v498 = vmul.f32 %v306, %v248
      %v499 = vmul.f32 %v311, %v249
      %v500 = vmul.f32 %v311, %v250
      %v501 = vmul.f32 %v316, %v251
      %v502 = vmul.f32 %v316, %v252
      %v503 = vmul.f32 %v321, %v243
      %v504 = vmul.f32 %v321, %v244
      %v505 = vmul.f32 %v326, %v245
      %v506 = vmul.f32 %v326, %v246
      %v507 = vmul.f32 %v331, %v247
      %v508 = vmul.f32 %v331, %v248
      %v509 = vmul.f32 %v336, %v249
      %v510 = vmul.f32 %v336, %v250
      %v511 = vmul.f32 %v341, %v251
      %v512 = vmul.f32 %v341, %v252
      %v513 = vmul.f32 %v346, %v243
      %v514 = vmul.f32 %v346, %v244
      %v515 = vmul.f32 %v351, %v245
      %v516 = vmul.f32 %v351, %v246
      %v517 = vmul.f32 %v356, %v247
      %v518 = vmul.f32 %v356, %v248
      %v519 = vmul.f32 %v361, %v249
      %v520 = vmul.f32 %v361, %v250
      %v521 = vmul.f32 %v366, %v251
      %v522 = vmul.f32 %v366, %v252
      %v523 = vmul.f32 %v371, %v243
      %v524 = vmul.f32 %v371, %v244
      %v525 = vmul.f32 %v376, %v245
      %v526 = vmul.f32 %v376, %v246
      %v527 = vmul.f32 %v381, %v247
      %v528 = vmul.f32 %v381, %v248
      %v529 = vmul.f32 %v386, %v249
      %v530 = vmul.f32 %v386, %v250
      %v531 = vmul.f32 %v391, %v251
      %v532 = vmul.f32 %v391, %v252
      %v533 = vmul.f32 %v396, %v243
      %v534 = vmul.f32 %v396, %v244
      %v535 = vmul.f32 %v401, %v245
      %v536 = vmul.f32 %v401, %v246
      %v537 = vmul.f32 %v406, %v247
      %v538 = vmul.f32 %v406, %v248
      %v539 = vmul.f32 %v411, %v249
      %v540 = vmul.f32 %v411, %v250
      %v541 = vmul.f32 %v416, %v251
      %v542 = vmul.f32 %v416, %v252
      %v543 = vmul.f32 %v421, %v243
      %v544 = vmul.f32 %v421, %v244
      %v545 = vmul.f32 %v426, %v245
      %v546 = vmul.f32 %v426, %v246
      %v547 = vmul.f32 %v431, %v247
      %v548 = vmul.f32 %v431, %v248
      %v549 = vmul.f32 %v436, %v249
      %v550 = vmul.f32 %v436, %v250
      %v551 = vmul.f32 %v441, %v251
      %v552 = vmul.f32 %v441, %v252
      %v553 = vmul.f32 %v446, %v243
      %v554 = vmul.f32 %v446, %v244
      %v555 = vmul.f32 %v451, %v245
      %v556 = vmul.f32 %v451, %v246
      %v557 = vmul.f32 %v456, %v247
      %v558 = vmul.f32 %v456, %v248
      %v559 = vmul.f32 %v461, %v249
      %v560 = vmul.f32 %v461, %v250
      %v561 = vmul.f32 %v466, %v251
      %v562 = vmul.f32 %v466, %v252
      %v563 = vmul.f32 %v471, %v243
      %v564 = vmul.f32 %v471, %v244
      %v565 = vmul.f32 %v476, %v245
      %v566 = vmul.f32 %v476, %v246
      %v567 = vmul.f32 %v481, %v247
      %v568 = vmul.f32 %v481, %v248
      %v569 = vmul.f32 %v486, %v249
      %v570 = vmul.f32 %v486, %v250
      %v571 = vmul.f32 %v491, %v251
      %v572 = vmul.f32 %v491, %v252
      %573 = vst [vmem:[%s225] sm:$0xff] %v493
      %574 = vst [vmem:[%s225 + $0x8] sm:$0xff] %v494
      %575 = vst [vmem:[%s225 + $0x10] sm:$0xff] %v495
      %576 = vst [vmem:[%s225 + $0x18] sm:$0xff] %v496
      %577 = vst [vmem:[%s225 + $0x20] sm:$0xff] %v497
      %578 = vst [vmem:[%s225 + $0x28] sm:$0xff] %v498
      %579 = vst [vmem:[%s225 + $0x30] sm:$0xff] %v499
      %580 = vst [vmem:[%s225 + $0x38] sm:$0xff] %v500
      %581 = vst [vmem:[%s225 + $0x40] sm:$0xf] %v501
      %582 = vst [vmem:[%s225 + $0x48] sm:$0xf] %v502
      %583 = vst [vmem:[%s225 + $0x50] sm:$0xff] %v503
      %584 = vst [vmem:[%s225 + $0x58] sm:$0xff] %v504
      %585 = vst [vmem:[%s225 + $0x60] sm:$0xff] %v505
      %586 = vst [vmem:[%s225 + $0x68] sm:$0xff] %v506
      %587 = vst [vmem:[%s225 + $0x70] sm:$0xff] %v507
      %588 = vst [vmem:[%s225 + $0x78] sm:$0xff] %v508
      %589 = vst [vmem:[%s225 + $0x80] sm:$0xff] %v509
      %590 = vst [vmem:[%s225 + $0x88] sm:$0xff] %v510
      %591 = vst [vmem:[%s225 + $0x90] sm:$0xf] %v511
      %592 = vst [vmem:[%s225 + $0x98] sm:$0xf] %v512
      %593 = vst [vmem:[%s225 + $0xa0] sm:$0xff] %v513
      %594 = vst [vmem:[%s225 + $0xa8] sm:$0xff] %v514
      %595 = vst [vmem:[%s225 + $0xb0] sm:$0xff] %v515
      %596 = vst [vmem:[%s225 + $0xb8] sm:$0xff] %v516
      %597 = vst [vmem:[%s225 + $0xc0] sm:$0xff] %v517
      %598 = vst [vmem:[%s225 + $0xc8] sm:$0xff] %v518
      %599 = vst [vmem:[%s225 + $0xd0] sm:$0xff] %v519
      %600 = vst [vmem:[%s225 + $0xd8] sm:$0xff] %v520
      %601 = vst [vmem:[%s225 + $0xe0] sm:$0xf] %v521
      %602 = vst [vmem:[%s225 + $0xe8] sm:$0xf] %v522
      %603 = vst [vmem:[%s225 + $0xf0] sm:$0xff] %v523
      %604 = vst [vmem:[%s225 + $0xf8] sm:$0xff] %v524
      %605 = vst [vmem:[%s225 + $0x100] sm:$0xff] %v525
      %606 = vst [vmem:[%s225 + $0x108] sm:$0xff] %v526
      %607 = vst [vmem:[%s225 + $0x110] sm:$0xff] %v527
      %608 = vst [vmem:[%s225 + $0x118] sm:$0xff] %v528
      %609 = vst [vmem:[%s225 + $0x120] sm:$0xff] %v529
      %610 = vst [vmem:[%s225 + $0x128] sm:$0xff] %v530
      %611 = vst [vmem:[%s225 + $0x130] sm:$0xf] %v531
      %612 = vst [vmem:[%s225 + $0x138] sm:$0xf] %v532
      %613 = vst [vmem:[%s225 + $0x140] sm:$0xff] %v533
      %614 = vst [vmem:[%s225 + $0x148] sm:$0xff] %v534
      %615 = vst [vmem:[%s225 + $0x150] sm:$0xff] %v535
      %616 = vst [vmem:[%s225 + $0x158] sm:$0xff] %v536
      %617 = vst [vmem:[%s225 + $0x160] sm:$0xff] %v537
      %618 = vst [vmem:[%s225 + $0x168] sm:$0xff] %v538
      %619 = vst [vmem:[%s225 + $0x170] sm:$0xff] %v539
      %620 = vst [vmem:[%s225 + $0x178] sm:$0xff] %v540
      %621 = vst [vmem:[%s225 + $0x180] sm:$0xf] %v541
      %622 = vst [vmem:[%s225 + $0x188] sm:$0xf] %v542
      %623 = vst [vmem:[%s225 + $0x190] sm:$0xff] %v543
      %624 = vst [vmem:[%s225 + $0x198] sm:$0xff] %v544
      %625 = vst [vmem:[%s225 + $0x1a0] sm:$0xff] %v545
      %626 = vst [vmem:[%s225 + $0x1a8] sm:$0xff] %v546
      %627 = vst [vmem:[%s225 + $0x1b0] sm:$0xff] %v547
      %628 = vst [vmem:[%s225 + $0x1b8] sm:$0xff] %v548
      %629 = vst [vmem:[%s225 + $0x1c0] sm:$0xff] %v549
      %630 = vst [vmem:[%s225 + $0x1c8] sm:$0xff] %v550
      %631 = vst [vmem:[%s225 + $0x1d0] sm:$0xf] %v551
      %632 = vst [vmem:[%s225 + $0x1d8] sm:$0xf] %v552
      %633 = vst [vmem:[%s225 + $0x1e0] sm:$0xff] %v553
      %634 = vst [vmem:[%s225 + $0x1e8] sm:$0xff] %v554
      %635 = vst [vmem:[%s225 + $0x1f0] sm:$0xff] %v555
      %636 = vst [vmem:[%s225 + $0x1f8] sm:$0xff] %v556
      %637 = vst [vmem:[%s225 + $0x200] sm:$0xff] %v557
      %638 = vst [vmem:[%s225 + $0x208] sm:$0xff] %v558
      %639 = vst [vmem:[%s225 + $0x210] sm:$0xff] %v559
      %640 = vst [vmem:[%s225 + $0x218] sm:$0xff] %v560
      %641 = vst [vmem:[%s225 + $0x220] sm:$0xf] %v561
      %642 = vst [vmem:[%s225 + $0x228] sm:$0xf] %v562
      %643 = vst [vmem:[%s225 + $0x230] sm:$0xff] %v563
      %644 = vst [vmem:[%s225 + $0x238] sm:$0xff] %v564
      %645 = vst [vmem:[%s225 + $0x240] sm:$0xff] %v565
      %646 = vst [vmem:[%s225 + $0x248] sm:$0xff] %v566
      %647 = vst [vmem:[%s225 + $0x250] sm:$0xff] %v567
      %648 = vst [vmem:[%s225 + $0x258] sm:$0xff] %v568
      %649 = vst [vmem:[%s225 + $0x260] sm:$0xff] %v569
      %650 = vst [vmem:[%s225 + $0x268] sm:$0xff] %v570
      %651 = vst [vmem:[%s225 + $0x270] sm:$0xf] %v571
      %652 = vst [vmem:[%s225 + $0x278] sm:$0xf] %v572
      %s653 = smul.u32 8, %s19
      %s654 = smul.u32 2, %s20
      %p655 = scmp.lt.s32.totalorder %s18, 1
      %s656 = scalar_select %p655, %s18, 1
      %p657 = scmp.lt.s32.totalorder %s653, 7
      %s658 = scalar_select %p657, %s653, 7
      %p659 = scmp.lt.s32.totalorder %s654, 1
      %s660 = scalar_select %p659, %s654, 1
      %s661 = smul.addr %s658, 10
      %s662 = sadd.s32 %s660, %s661
      %s663 = smul.addr %s656, 80
      %s664 = sadd.s32 %s662, %s663
      %s665 = smul.addr %s664, 8
      %s666 = scalar_lea.vmem %s2, %s665
      // Predicated region
      $region29: #{tpu_custom_call.1} parent=27 // pred_check
        %p667 = pneg %p108
      $region30: #{tpu_custom_call.1} parent=27 // pred_check_branch
        %669 = sbr.rel (%p667) target = $region32
      $region31: #{tpu_custom_call.1} parent=27 // pred_region
        %s670 = smul.u32 8, %s19
        %s671 = smul.u32 2, %s20
      $region32: #{tpu_custom_call.1} parent=27 // pred_fallthru
        _
    $region28: #{tpu_custom_call.1} parent=5 // pred_fallthru
      _
    %p672 = scmp.le.s32.totalorder 2, %s8
    // Predicated region
    $region33: #{tpu_custom_call.1} parent=5 // pred_check
      %p673 = pneg %p672
    $region34: #{tpu_custom_call.1} parent=5 // pred_check_branch
      %675 = sbr.rel (%p673) target = $region36
    $region35: #{tpu_custom_call.1} parent=5 // pred_region
      %s676 = ssub.s32 %s8, 2
      // Predicated region
      $region37: #{tpu_custom_call.1} parent=35 // pred_check
        %p677 = pneg %p114
      $region38: #{tpu_custom_call.1} parent=35 // pred_check_branch
        %679 = sbr.rel (%p677) target = $region40
      $region39: #{tpu_custom_call.1} parent=35 // pred_region
        %s680 = smul.u32 8, %s22
        %s681 = smul.u32 2, %s23
        %p682 = scmp.lt.s32.totalorder %s21, 1
        %s683 = scalar_select %p682, %s21, 1
        %p684 = scmp.lt.s32.totalorder %s680, 7
        %s685 = scalar_select %p684, %s680, 7
        %p686 = scmp.lt.s32.totalorder %s681, 1
        %s687 = scalar_select %p686, %s681, 1
        %s688 = smul.addr %s685, 10
        %s689 = sadd.s32 %s687, %s688
        %s690 = smul.addr %s683, 80
        %s691 = sadd.s32 %s689, %s690
        %s692 = smul.addr %s691, 8
        %s693 = scalar_lea.vmem %s2, %s692
      $region40: #{tpu_custom_call.1} parent=35 // pred_fallthru
        _
    $region36: #{tpu_custom_call.1} parent=5 // pred_fallthru
      _
  $region6: #{tpu_custom_call.1} parent=0 // loop_footer
    %s12 = sadd.s32 1, %s8
  $region7: #{tpu_custom_call.1} parent=0 // loop_footer_branch
    %7 = sbr.rel target = $region3
  $region8: #{tpu_custom_call.1} parent=0 // loop_exit
    _

</llo_original>
